<compile_context>
chip_gen: v5e
topology: v5e:2x2
jax: 0.10.0
libtpu: 0.0.40
codegen_flags: <defaults>
</compile_context>

<pallas_src>
import functools

import jax
import jax.numpy as jnp
from jax.experimental import pallas as pl
from jax.experimental.pallas import tpu as pltpu

_VMEM_BUDGET_BYTES = 36 * 1024 * 1024   # target working set per grid step (fits every gen)
_VMEM_LIMIT_BYTES = 48 * 1024 * 1024    # raised scoped VMEM; < 64 MiB physical on v7x
_N_TEMPS = 8                            # upper bound on block-sized in-kernel temporaries


def _gdl_kernel(x_ref, y_ref, o_ref, *, alpha, compute_dtype):
    """One block of images: x_ref/y_ref are (TN, H, W); o_ref is (TN, H-1, W-1)."""
    x = x_ref[...].astype(compute_dtype)   # no-op when compute_dtype == input dtype (bf16/f32)
    y = y_ref[...].astype(compute_dtype)
    H, W = x.shape[1], x.shape[2]

    # Windowed differences, produced directly on the overlapping (H-1, W-1) grid so no
    # separate t1/t2 crops are needed before the final store.
    dx_h = x[:, 1:, :W - 1] - x[:, :-1, :W - 1]
    dy_h = y[:, 1:, :W - 1] - y[:, :-1, :W - 1]
    dx_w = x[:, :H - 1, :W - 1] - x[:, :H - 1, 1:]
    dy_w = y[:, :H - 1, :W - 1] - y[:, :H - 1, 1:]

    d_h = jnp.abs(dx_h) - jnp.abs(dy_h)
    d_w = jnp.abs(dx_w) - jnp.abs(dy_w)

    if alpha == 2:
        # (|a|-|b|)^2 == ||a|-|b||^2: outer abs dropped, plain VPU multiplies.
        loss = d_h * d_h + d_w * d_w
    elif isinstance(alpha, int) and alpha % 2 == 0:
        loss = d_h ** alpha + d_w ** alpha          # even power: abs still redundant
    else:
        loss = jnp.abs(d_h) ** alpha + jnp.abs(d_w) ** alpha

    o_ref[...] = loss.astype(o_ref.dtype)


def gradient_difference_loss(x, y, alpha: int = 2):
    """Pallas equivalent of GradientDifferenceLoss(alpha).forward(x, y).

    x, y: (B, T, C, H, W) arrays of identical shape, H >= 2, W >= 2.
    Returns the per-pixel loss on the overlapping grid, shape (B, T, C, H-1, W-1).
    """
    assert x.shape == y.shape, "x and y must have the same shape"
    assert x.ndim == 5, "expected a 5-D (B, T, C, H, W) tensor"
    B, T, C, H, W = x.shape
    assert H >= 2 and W >= 2, "spatial dims must be >= 2"

    N = B * T * C
    x3 = x.reshape(N, H, W)   # metadata-only for default row-major layouts
    y3 = y.reshape(N, H, W)

    in_dtype = jnp.result_type(x.dtype, y.dtype)
    out_dtype = in_dtype
    # Native-dtype compute for bf16/f32 (halves vreg + VMEM pressure on v6e/v7x for bf16);
    # everything else is upcast to f32.
    if in_dtype in (jnp.bfloat16, jnp.float32):
        compute_dtype = in_dtype
    else:
        compute_dtype = jnp.float32

    in_item = jnp.dtype(x.dtype).itemsize
    out_item = jnp.dtype(out_dtype).itemsize
    cmp_item = jnp.dtype(compute_dtype).itemsize

    # Per-image VMEM cost: 2 inputs x 2 buffers, 2 output buffers, plus an upper bound on
    # block-sized compute temporaries. Size tn so one grid step stays inside the budget.
    per_img = (4 * H * W * in_item
               + 2 * (H - 1) * (W - 1) * out_item
               + _N_TEMPS * H * W * cmp_item)
    tn = int(max(1, min(N, _VMEM_BUDGET_BYTES // max(1, per_img))))
    # v7x megacore: keep at least 2 grid steps so "parallel" can shard across both cores.
    if N >= 2:
        tn = min(tn, pl.cdiv(N, 2))
    grid = (pl.cdiv(N, tn),)

    kernel = functools.partial(_gdl_kernel, alpha=alpha, compute_dtype=compute_dtype)

    out = pl.pallas_call(
        kernel,
        out_shape=jax.ShapeDtypeStruct((N, H - 1, W - 1), out_dtype),
        grid=grid,
        in_specs=[
            pl.BlockSpec((tn, H, W), lambda i: (i, 0, 0)),
            pl.BlockSpec((tn, H, W), lambda i: (i, 0, 0)),
        ],
        out_specs=pl.BlockSpec((tn, H - 1, W - 1), lambda i: (i, 0, 0)),
        compiler_params=pltpu.CompilerParams(
            dimension_semantics=("parallel",),          # independent blocks -> megacore
            vmem_limit_bytes=_VMEM_LIMIT_BYTES,         # allow the larger double-buffered blocks
        ),
    )(x3, y3)
    return out.reshape(B, T, C, H - 1, W - 1)


def _reference(x, y, alpha=2):
    """Pure-jnp reference (torch formula, summed on the overlapping grid)."""
    t1 = jnp.abs(jnp.abs(x[:, :, :, 1:, :] - x[:, :, :, :-1, :]) -
                 jnp.abs(y[:, :, :, 1:, :] - y[:, :, :, :-1, :])) ** alpha
    t2 = jnp.abs(jnp.abs(x[:, :, :, :, :-1] - x[:, :, :, :, 1:]) -
                 jnp.abs(y[:, :, :, :, :-1] - y[:, :, :, :, 1:])) ** alpha
    return t1[:, :, :, :, :-1] + t2[:, :, :, :-1, :]


if __name__ == "__main__":
    key = jax.random.PRNGKey(0)
    kx, ky = jax.random.split(key)
    # Small (B, T, C, H, W) shape implied by the module's 5-D slicing pattern.
    # (Production DGMR planes are 256x256; this small shape is only a correctness check.)
    shape = (2, 4, 1, 16, 16)
    x = jax.random.normal(kx, shape, dtype=jnp.float32)
    y = jax.random.normal(ky, shape, dtype=jnp.float32)

    got = jax.block_until_ready(gradient_difference_loss(x, y, alpha=2))
    want = jax.block_until_ready(_reference(x, y, alpha=2))

    if got.shape == want.shape and bool(jnp.allclose(got, want, rtol=1e-5, atol=1e-5)):
        print("KERNEL_OK")
    else:
        print("MISMATCH: got shape", got.shape, "want shape", want.shape,
              "max abs diff", float(jnp.max(jnp.abs(got - want))))
</pallas_src>

<mosaic_0001>
module attributes {stable_mosaic.version = 11 : i64} {
  func.func @_gdl_kernel(%arg0: i32, %arg1: memref<4x16x16xf32, #tpu.memory_space<vmem>>, %arg2: memref<4x16x16xf32, #tpu.memory_space<vmem>>, %arg3: memref<4x15x15xf32, #tpu.memory_space<vmem>>) attributes {dimension_semantics = [#tpu.dimension_semantics<parallel>], iteration_bounds = array<i64: 2>, scalar_prefetch = 0 : i64, scratch_operands = 0 : i64, tpu.core_type = #tpu.core_type<tc>, window_params = [{transform_indices = @transform_0, window_bounds = array<i64: 4, 16, 16>}, {transform_indices = @transform_1, window_bounds = array<i64: 4, 16, 16>}, {transform_indices = @transform_2, window_bounds = array<i64: 4, 15, 15>}]} {
    %c0 = arith.constant 0 : index
    %c0_0 = arith.constant 0 : index
    %c0_1 = arith.constant 0 : index
    %0 = vector.load %arg1[%c0, %c0_0, %c0_1] : memref<4x16x16xf32, #tpu.memory_space<vmem>>, vector<4x16x16xf32>
    %c0_2 = arith.constant 0 : index
    %c0_3 = arith.constant 0 : index
    %c0_4 = arith.constant 0 : index
    %1 = vector.load %arg2[%c0_2, %c0_3, %c0_4] : memref<4x16x16xf32, #tpu.memory_space<vmem>>, vector<4x16x16xf32>
    %2 = vector.extract_strided_slice %0 {offsets = [0, 1, 0], sizes = [4, 15, 15], strides = [1, 1, 1]} : vector<4x16x16xf32> to vector<4x15x15xf32>
    %3 = vector.extract_strided_slice %0 {offsets = [0, 0, 0], sizes = [4, 15, 15], strides = [1, 1, 1]} : vector<4x16x16xf32> to vector<4x15x15xf32>
    %4 = arith.subf %2, %3 : vector<4x15x15xf32>
    %5 = vector.extract_strided_slice %1 {offsets = [0, 1, 0], sizes = [4, 15, 15], strides = [1, 1, 1]} : vector<4x16x16xf32> to vector<4x15x15xf32>
    %6 = vector.extract_strided_slice %1 {offsets = [0, 0, 0], sizes = [4, 15, 15], strides = [1, 1, 1]} : vector<4x16x16xf32> to vector<4x15x15xf32>
    %7 = arith.subf %5, %6 : vector<4x15x15xf32>
    %8 = vector.extract_strided_slice %0 {offsets = [0, 0, 0], sizes = [4, 15, 15], strides = [1, 1, 1]} : vector<4x16x16xf32> to vector<4x15x15xf32>
    %9 = vector.extract_strided_slice %0 {offsets = [0, 0, 1], sizes = [4, 15, 15], strides = [1, 1, 1]} : vector<4x16x16xf32> to vector<4x15x15xf32>
    %10 = arith.subf %8, %9 : vector<4x15x15xf32>
    %11 = vector.extract_strided_slice %1 {offsets = [0, 0, 0], sizes = [4, 15, 15], strides = [1, 1, 1]} : vector<4x16x16xf32> to vector<4x15x15xf32>
    %12 = vector.extract_strided_slice %1 {offsets = [0, 0, 1], sizes = [4, 15, 15], strides = [1, 1, 1]} : vector<4x16x16xf32> to vector<4x15x15xf32>
    %13 = arith.subf %11, %12 : vector<4x15x15xf32>
    %14 = math.absf %4 : vector<4x15x15xf32>
    %15 = math.absf %7 : vector<4x15x15xf32>
    %16 = arith.subf %14, %15 : vector<4x15x15xf32>
    %17 = math.absf %10 : vector<4x15x15xf32>
    %18 = math.absf %13 : vector<4x15x15xf32>
    %19 = arith.subf %17, %18 : vector<4x15x15xf32>
    %20 = arith.mulf %16, %16 : vector<4x15x15xf32>
    %21 = arith.mulf %19, %19 : vector<4x15x15xf32>
    %22 = arith.addf %20, %21 : vector<4x15x15xf32>
    %c0_5 = arith.constant 0 : index
    %c0_6 = arith.constant 0 : index
    %c0_7 = arith.constant 0 : index
    %23 = vector.load %arg3[%c0_5, %c0_6, %c0_7] : memref<4x15x15xf32, #tpu.memory_space<vmem>>, vector<4x15x15xf32>
    tpu.vector_store %arg3[%c0_5, %c0_6, %c0_7], %22 {strides = array<i32>} : memref<4x15x15xf32, #tpu.memory_space<vmem>>, vector<4x15x15xf32>,
    return
  }
  func.func @transform_0(%arg0: i32) -> (i32, i32, i32) {
    %c0_i32 = arith.constant 0 : i32
    %c0_i32_0 = arith.constant 0 : i32
    %c0_i32_1 = arith.constant 0 : i32
    return %arg0, %c0_i32, %c0_i32_0 : i32, i32, i32
  }
  func.func @transform_1(%arg0: i32) -> (i32, i32, i32) {
    %c0_i32 = arith.constant 0 : i32
    %c0_i32_0 = arith.constant 0 : i32
    %c0_i32_1 = arith.constant 0 : i32
    return %arg0, %c0_i32, %c0_i32_0 : i32, i32, i32
  }
  func.func @transform_2(%arg0: i32) -> (i32, i32, i32) {
    %c0_i32 = arith.constant 0 : i32
    %c0_i32_0 = arith.constant 0 : i32
    %c0_i32_1 = arith.constant 0 : i32
    return %arg0, %c0_i32, %c0_i32_0 : i32, i32, i32
  }
}

</mosaic_0001>

<llo_original>
// kernel: tpu_custom_call.1
$region0: #{tpu_custom_call.1}
  #allocation0 [shape = 'u32[]', space=smem, size = 0x4, offset = 0x4, fixed_abs, tag = 'smem constant byte address 0x4 - core index']
  #allocation1 [shape = 'u32[72,128]{1,0:T(1,128)}', space=vmem, size = 0x9000, scoped, tag = 'internal scratch']
  %s0 = inlined_call_operand.hbm [shape: f32[8,16,16], index: 0, kind: input, shape index: {}]
  %s1 = inlined_call_operand.hbm [shape: f32[8,16,16], index: 1, kind: input, shape index: {}]
  %s2 = inlined_call_operand.vmem [shape: f32[8,15,15], index: 2, kind: output, shape index: {}]
  %s3 = sld [smem:[#allocation0]]
  $region49: #{tpu_custom_call.1} parent=0
    _
  %s5 = ssub.s32 1, %s3
  %s6 = scalar_select 0, %s5, %s3
  $region1: #{tpu_custom_call.1} parent=0
    #allocation2 [shape = 'u8[65536]{0}', space=vmem, size = 0x10000, scoped, tag = 'input window, operand 0']
    #allocation3 [shape = 's32[2]{0}', space=sflag, size = 0x8, scoped, tag = 'scoped memory for tpu_custom_call.1']
    #allocation4 [shape = 'u8[65536]{0}', space=vmem, size = 0x10000, scoped, tag = 'input window, operand 1']
    #allocation5 [shape = 's32[2]{0}', space=sflag, size = 0x8, scoped, tag = 'scoped memory for tpu_custom_call.1']
    %7 = vsyncpa [#allocation3], 0
    %s8 = scalar_lea.sflag [#allocation3], 1
    %9 = vsyncpa %s8, 0
    %10 = vsyncpa [#allocation5], 0
    %s11 = scalar_lea.sflag [#allocation5], 1
    %12 = vsyncpa %s11, 0
    loop: start=0, step=1, limit=4
    $region2: #{tpu_custom_call.1} parent=1 // loop_pre_header
      _
    $region3: #{tpu_custom_call.1} parent=1 // loop_header
      %s14 = sphi 0, %s18
      %p15 = scmp.ge.s32.totalorder %s14, 4
      %s24 = sphi 0, %s26
      %s27 = sphi 0, %s24
      %s28 = sphi 0, %s27
      %s44 = sphi 0, %s28
      %s50 = sphi 0, %s52
      %s53 = sphi 0, %s50
      %s54 = sphi 0, %s53
      %s70 = sphi 0, %s54
      %s76 = sphi 0, %s78
      %s79 = sphi 0, %s76
      %s80 = sphi 0, %s79
      %s96 = sphi 0, %s80
    $region4: #{tpu_custom_call.1} parent=1 // loop_header_branch
      %17 = sbr.rel (%p15) target = $region8
    $region5: #{tpu_custom_call.1} parent=1 // loop_body
      %s19 = ssub.s32 %s14, 1
      %s20 = ssub.s32 %s14, 2
      %s21 = sadd.s32 %s14, 1
      %s22 = ssub.s32 %s14, %s21
      %p23 = scmp.eq.s32.totalorder %s22, 0
      %s25 = sadd.s32 %s24, 1
      %s26 = scalar_select %p23, %s24, %s25
      %p29 = pneg %p23
      %p30 = scmp.eq.s32.totalorder %s14, 1
      %p31 = por %p29, %p30
      %p32 = scmp.ne.s32.totalorder %s24, %s27
      %p33 = scmp.eq.s32.totalorder %s14, 0
      %p34 = por %p32, %p33
      %p35 = scmp.ne.s32.totalorder %s24, %s27
      %p36 = scmp.eq.s32.totalorder %s19, 1
      %p37 = por %p35, %p36
      %p38 = scmp.ne.s32.totalorder %s27, %s28
      %p39 = scmp.eq.s32.totalorder %s19, 0
      %p40 = por %p38, %p39
      %p41 = scmp.ne.s32.totalorder %s27, %s28
      %p42 = scmp.eq.s32.totalorder %s20, 1
      %p43 = por %p41, %p42
      %p45 = scmp.ne.s32.totalorder %s28, %s44
      %p46 = scmp.eq.s32.totalorder %s20, 0
      %p47 = por %p45, %p46
      %s48 = ssub.s32 %s14, %s21
      %p49 = scmp.eq.s32.totalorder %s48, 0
      %s51 = sadd.s32 %s50, 1
      %s52 = scalar_select %p49, %s50, %s51
      %p55 = pneg %p49
      %p56 = scmp.eq.s32.totalorder %s14, 1
      %p57 = por %p55, %p56
      %p58 = scmp.ne.s32.totalorder %s50, %s53
      %p59 = scmp.eq.s32.totalorder %s14, 0
      %p60 = por %p58, %p59
      %p61 = scmp.ne.s32.totalorder %s50, %s53
      %p62 = scmp.eq.s32.totalorder %s19, 1
      %p63 = por %p61, %p62
      %p64 = scmp.ne.s32.totalorder %s53, %s54
      %p65 = scmp.eq.s32.totalorder %s19, 0
      %p66 = por %p64, %p65
      %p67 = scmp.ne.s32.totalorder %s53, %s54
      %p68 = scmp.eq.s32.totalorder %s20, 1
      %p69 = por %p67, %p68
      %p71 = scmp.ne.s32.totalorder %s54, %s70
      %p72 = scmp.eq.s32.totalorder %s20, 0
      %p73 = por %p71, %p72
      %s74 = ssub.s32 %s14, %s21
      %p75 = scmp.eq.s32.totalorder %s74, 0
      %s77 = sadd.s32 %s76, 1
      %s78 = scalar_select %p75, %s76, %s77
      %p81 = pneg %p75
      %p82 = scmp.eq.s32.totalorder %s14, 1
      %p83 = por %p81, %p82
      %p84 = scmp.ne.s32.totalorder %s76, %s79
      %p85 = scmp.eq.s32.totalorder %s14, 0
      %p86 = por %p84, %p85
      %p87 = scmp.ne.s32.totalorder %s76, %s79
      %p88 = scmp.eq.s32.totalorder %s19, 1
      %p89 = por %p87, %p88
      %p90 = scmp.ne.s32.totalorder %s79, %s80
      %p91 = scmp.eq.s32.totalorder %s19, 0
      %p92 = por %p90, %p91
      %p93 = scmp.ne.s32.totalorder %s79, %s80
      %p94 = scmp.eq.s32.totalorder %s20, 1
      %p95 = por %p93, %p94
      %p97 = scmp.ne.s32.totalorder %s80, %s96
      %p98 = scmp.eq.s32.totalorder %s20, 0
      %p99 = por %p97, %p98
      %p100 = scmp.le.s32.totalorder 1, %s14
      %p101 = scmp.lt.s32.totalorder %s14, 3
      %p102 = pnand %p100, %p101
      %p103 = pneg %p102
      // Predicated region
      $region9: #{tpu_custom_call.1} parent=5 // pred_check
        _
      $region10: #{tpu_custom_call.1} parent=5 // pred_check_branch
        %105 = sbr.rel (%p102) target = $region12
      $region11: #{tpu_custom_call.1} parent=5 // pred_region
        %s106 = ssub.s32 %s14, 1
      $region12: #{tpu_custom_call.1} parent=5 // pred_fallthru
        _
      %p107 = scmp.lt.s32.totalorder %s14, 2
      // Predicated region
      $region13: #{tpu_custom_call.1} parent=5 // pred_check
        %p108 = pneg %p107
      $region14: #{tpu_custom_call.1} parent=5 // pred_check_branch
        %110 = sbr.rel (%p108) target = $region16
      $region15: #{tpu_custom_call.1} parent=5 // pred_region
        // Predicated region
        $region17: #{tpu_custom_call.1} parent=15 // pred_check
          %p111 = pneg %p34
        $region18: #{tpu_custom_call.1} parent=15 // pred_check_branch
          %113 = sbr.rel (%p111) target = $region20
        $region19: #{tpu_custom_call.1} parent=15 // pred_region
          %s114 = sand.u32 %s24, 1
          %s115 = scalar_lea.sflag [#allocation3], %s114
          %s116 = sand.u32 %s24, 1
          %s117 = smul.addr %s116, 64
          %s118 = scalar_lea.vmem [#allocation2], %s117
          %s119 = smul.u32 4, %s14
          %121 = vsyncadd %s115, 0
          %s122 = smul.addr %s119, 2
          %s123 = smul.addr %s122, 8
          %s124 = scalar_lea.hbm %s0, %s123
          %s125 = sshll.u32 %s124, 4
          %s126 = int_to_ptr.hbm [resolvable:$true] %s125
          %s127 = sshll.u32 %s118, 4
          %s128 = int_to_ptr.vmem [resolvable:$true] %s127
          %133 = dma.hbm_to_vmem [thread:$0]  %s126, 1024, %s128, %s115, 128, 128, 8
        $region20: #{tpu_custom_call.1} parent=15 // pred_fallthru
          _
        // Predicated region
        $region21: #{tpu_custom_call.1} parent=15 // pred_check
          %p134 = pneg %p60
        $region22: #{tpu_custom_call.1} parent=15 // pred_check_branch
          %136 = sbr.rel (%p134) target = $region24
        $region23: #{tpu_custom_call.1} parent=15 // pred_region
          %s137 = sand.u32 %s50, 1
          %s138 = scalar_lea.sflag [#allocation5], %s137
          %s139 = sand.u32 %s50, 1
          %s140 = smul.addr %s139, 64
          %s141 = scalar_lea.vmem [#allocation4], %s140
          %s142 = smul.u32 4, %s14
          %144 = vsyncadd %s138, 0
          %s145 = smul.addr %s142, 2
          %s146 = smul.addr %s145, 8
          %s147 = scalar_lea.hbm %s1, %s146
          %s148 = sshll.u32 %s147, 4
          %s149 = int_to_ptr.hbm [resolvable:$true] %s148
          %s150 = sshll.u32 %s141, 4
          %s151 = int_to_ptr.vmem [resolvable:$true] %s150
          %156 = dma.hbm_to_vmem [thread:$0]  %s149, 1024, %s151, %s138, 128, 128, 8
        $region24: #{tpu_custom_call.1} parent=15 // pred_fallthru
          _
      $region16: #{tpu_custom_call.1} parent=5 // pred_fallthru
        _
      %p157 = scmp.le.s32.totalorder 1, %s14
      %p158 = scmp.lt.s32.totalorder %s14, 3
      %p159 = pnand %p157, %p158
      %p160 = pneg %p159
      // Predicated region
      $region25: #{tpu_custom_call.1} parent=5 // pred_check
        _
      $region26: #{tpu_custom_call.1} parent=5 // pred_check_branch
        %162 = sbr.rel (%p159) target = $region28
      $region27: #{tpu_custom_call.1} parent=5 // pred_region
        %s163 = ssub.s32 %s14, 1
        %s164 = sand.u32 %s27, 1
        %s165 = scalar_lea.sflag [#allocation3], %s164
        %s166 = sand.u32 %s27, 1
        %s167 = smul.addr %s166, 64
        %s168 = scalar_lea.vmem [#allocation2], %s167
        // Predicated region
        $region29: #{tpu_custom_call.1} parent=27 // pred_check
          %p169 = pneg %p40
        $region30: #{tpu_custom_call.1} parent=27 // pred_check_branch
          %171 = sbr.rel (%p169) target = $region32
        $region31: #{tpu_custom_call.1} parent=27 // pred_region
          %173 = dma.done %s165, 1024
        $region32: #{tpu_custom_call.1} parent=27 // pred_fallthru
          _
        %s174 = sand.u32 %s53, 1
        %s175 = scalar_lea.sflag [#allocation5], %s174
        %s176 = sand.u32 %s53, 1
        %s177 = smul.addr %s176, 64
        %s178 = scalar_lea.vmem [#allocation4], %s177
        // Predicated region
        $region33: #{tpu_custom_call.1} parent=27 // pred_check
          %p179 = pneg %p66
        $region34: #{tpu_custom_call.1} parent=27 // pred_check_branch
          %181 = sbr.rel (%p179) target = $region36
        $region35: #{tpu_custom_call.1} parent=27 // pred_region
          %183 = dma.done %s175, 1024
        $region36: #{tpu_custom_call.1} parent=27 // pred_fallthru
          _
        %s184 = sand.u32 %s27, 1
        %s185 = scalar_lea.sflag [#allocation3], %s184
        %s186 = sand.u32 %s27, 1
        %s187 = smul.addr %s186, 64
        %s188 = scalar_lea.vmem [#allocation2], %s187
        %p189 = pneg %p40
        %p190 = pneg %p37
        %s191 = sand.u32 %s53, 1
        %s192 = scalar_lea.sflag [#allocation5], %s191
        %s193 = sand.u32 %s53, 1
        %s194 = smul.addr %s193, 64
        %s195 = scalar_lea.vmem [#allocation4], %s194
        %p196 = pneg %p66
        %p197 = pneg %p63
        %p198 = pneg %p92
        %p199 = pneg %p89
        %s200 = smul.u32 4, %s19
        %p201 = scmp.lt.s32.totalorder %s200, 7
        %s202 = scalar_select %p201, %s200, 7
        %s203 = smul.addr %s202, 2
        %s204 = smul.addr %s203, 8
        %s205 = scalar_lea.vmem %s2, %s204
        %s206 = smul.u32 4, %s19
        %s207 = smul.u32 4, %s19
        %s208 = smul.u32 4, %s19
        %p209 = scmp.lt.s32.totalorder %s208, 7
        %s210 = scalar_select %p209, %s208, 7
        %s211 = smul.addr %s210, 2
        %s212 = smul.addr %s211, 8
        %s213 = scalar_lea.vmem %s2, %s212
        %s214 = smul.u32 4, %s19
        %v215 = vld [vmem:[%s168] sm:$0xff]
        %v216 = vld [vmem:[%s168 + $0x8] sm:$0xff]
        %v217 = vld [vmem:[%s168 + $0x10] sm:$0xff]
        %v218 = vld [vmem:[%s168 + $0x18] sm:$0xff]
        %v219 = vld [vmem:[%s168 + $0x20] sm:$0xff]
        %v220 = vld [vmem:[%s168 + $0x28] sm:$0xff]
        %v221 = vld [vmem:[%s168 + $0x30] sm:$0xff]
        %v222 = vld [vmem:[%s168 + $0x38] sm:$0xff]
        %v223 = vld [vmem:[%s178] sm:$0xff]
        %v224 = vld [vmem:[%s178 + $0x8] sm:$0xff]
        %v225 = vld [vmem:[%s178 + $0x10] sm:$0xff]
        %v226 = vld [vmem:[%s178 + $0x18] sm:$0xff]
        %v227 = vld [vmem:[%s178 + $0x20] sm:$0xff]
        %v228 = vld [vmem:[%s178 + $0x28] sm:$0xff]
        %v229 = vld [vmem:[%s178 + $0x30] sm:$0xff]
        %v230 = vld [vmem:[%s178 + $0x38] sm:$0xff]
        %vm239 = vcmask 1040384
        %v240 = vrot.slane %v215, 7
        %v241 = vrot.slane %v216, 7
        %v242 = vsel %vm239, %v240, %v241
        %v243 = vrot.slane %v217, 7
        %v244 = vrot.slane %v218, 7
        %v245 = vsel %vm239, %v243, %v244
        %v246 = vrot.slane %v219, 7
        %v247 = vrot.slane %v220, 7
        %v248 = vsel %vm239, %v246, %v247
        %v249 = vrot.slane %v221, 7
        %v250 = vrot.slane %v222, 7
        %v251 = vsel %vm239, %v249, %v250
        %v260 = vsub.f32 %v215, %v240
        %v261 = vsub.f32 %v216, %v242
        %v262 = vsub.f32 %v217, %v243
        %v263 = vsub.f32 %v218, %v245
        %v264 = vsub.f32 %v219, %v246
        %v265 = vsub.f32 %v220, %v248
        %v266 = vsub.f32 %v221, %v249
        %v267 = vsub.f32 %v222, %v251
        %v276 = vrot.slane %v223, 7
        %v277 = vrot.slane %v224, 7
        %v278 = vsel %vm239, %v276, %v277
        %v279 = vrot.slane %v225, 7
        %v280 = vrot.slane %v226, 7
        %v281 = vsel %vm239, %v279, %v280
        %v282 = vrot.slane %v227, 7
        %v283 = vrot.slane %v228, 7
        %v284 = vsel %vm239, %v282, %v283
        %v285 = vrot.slane %v229, 7
        %v286 = vrot.slane %v230, 7
        %v287 = vsel %vm239, %v285, %v286
        %v296 = vsub.f32 %v223, %v276
        %v297 = vsub.f32 %v224, %v278
        %v298 = vsub.f32 %v225, %v279
        %v299 = vsub.f32 %v226, %v281
        %v300 = vsub.f32 %v227, %v282
        %v301 = vsub.f32 %v228, %v284
        %v302 = vsub.f32 %v229, %v285
        %v303 = vsub.f32 %v230, %v287
        %304 = vrot.lane.b32.xlu0 %v215, 127
        %v305 = vpop.permute.xlu0 %304
        %306 = vrot.lane.b32.xlu0 %v216, 127
        %v307 = vpop.permute.xlu0 %306
        %308 = vrot.lane.b32.xlu0 %v217, 127
        %v309 = vpop.permute.xlu0 %308
        %310 = vrot.lane.b32.xlu0 %v218, 127
        %v311 = vpop.permute.xlu0 %310
        %312 = vrot.lane.b32.xlu0 %v219, 127
        %v313 = vpop.permute.xlu0 %312
        %314 = vrot.lane.b32.xlu0 %v220, 127
        %v315 = vpop.permute.xlu0 %314
        %316 = vrot.lane.b32.xlu0 %v221, 127
        %v317 = vpop.permute.xlu0 %316
        %318 = vrot.lane.b32.xlu0 %v222, 127
        %v319 = vpop.permute.xlu0 %318
        %v328 = vsub.f32 %v215, %v305
        %v329 = vsub.f32 %v216, %v307
        %v330 = vsub.f32 %v217, %v309
        %v331 = vsub.f32 %v218, %v311
        %v332 = vsub.f32 %v219, %v313
        %v333 = vsub.f32 %v220, %v315
        %v334 = vsub.f32 %v221, %v317
        %v335 = vsub.f32 %v222, %v319
        %336 = vrot.lane.b32.xlu0 %v223, 127
        %v337 = vpop.permute.xlu0 %336
        %338 = vrot.lane.b32.xlu0 %v224, 127
        %v339 = vpop.permute.xlu0 %338
        %340 = vrot.lane.b32.xlu0 %v225, 127
        %v341 = vpop.permute.xlu0 %340
        %342 = vrot.lane.b32.xlu0 %v226, 127
        %v343 = vpop.permute.xlu0 %342
        %344 = vrot.lane.b32.xlu0 %v227, 127
        %v345 = vpop.permute.xlu0 %344
        %346 = vrot.lane.b32.xlu0 %v228, 127
        %v347 = vpop.permute.xlu0 %346
        %348 = vrot.lane.b32.xlu0 %v229, 127
        %v349 = vpop.permute.xlu0 %348
        %350 = vrot.lane.b32.xlu0 %v230, 127
        %v351 = vpop.permute.xlu0 %350
        %v360 = vsub.f32 %v223, %v337
        %v361 = vsub.f32 %v224, %v339
        %v362 = vsub.f32 %v225, %v341
        %v363 = vsub.f32 %v226, %v343
        %v364 = vsub.f32 %v227, %v345
        %v365 = vsub.f32 %v228, %v347
        %v366 = vsub.f32 %v229, %v349
        %v367 = vsub.f32 %v230, %v351
        %v368 = vand.u32 2147483647, %v260
        %v369 = vand.u32 2147483647, %v261
        %v370 = vand.u32 2147483647, %v262
        %v371 = vand.u32 2147483647, %v263
        %v372 = vand.u32 2147483647, %v264
        %v373 = vand.u32 2147483647, %v265
        %v374 = vand.u32 2147483647, %v266
        %v375 = vand.u32 2147483647, %v267
        %v376 = vand.u32 2147483647, %v296
        %v377 = vand.u32 2147483647, %v297
        %v378 = vand.u32 2147483647, %v298
        %v379 = vand.u32 2147483647, %v299
        %v380 = vand.u32 2147483647, %v300
        %v381 = vand.u32 2147483647, %v301
        %v382 = vand.u32 2147483647, %v302
        %v383 = vand.u32 2147483647, %v303
        %v384 = vsub.f32 %v368, %v376
        %v385 = vsub.f32 %v369, %v377
        %v386 = vsub.f32 %v370, %v378
        %v387 = vsub.f32 %v371, %v379
        %v388 = vsub.f32 %v372, %v380
        %v389 = vsub.f32 %v373, %v381
        %v390 = vsub.f32 %v374, %v382
        %v391 = vsub.f32 %v375, %v383
        %v392 = vand.u32 2147483647, %v328
        %v393 = vand.u32 2147483647, %v329
        %v394 = vand.u32 2147483647, %v330
        %v395 = vand.u32 2147483647, %v331
        %v396 = vand.u32 2147483647, %v332
        %v397 = vand.u32 2147483647, %v333
        %v398 = vand.u32 2147483647, %v334
        %v399 = vand.u32 2147483647, %v335
        %v400 = vand.u32 2147483647, %v360
        %v401 = vand.u32 2147483647, %v361
        %v402 = vand.u32 2147483647, %v362
        %v403 = vand.u32 2147483647, %v363
        %v404 = vand.u32 2147483647, %v364
        %v405 = vand.u32 2147483647, %v365
        %v406 = vand.u32 2147483647, %v366
        %v407 = vand.u32 2147483647, %v367
        %v408 = vsub.f32 %v392, %v400
        %v409 = vsub.f32 %v393, %v401
        %v410 = vsub.f32 %v394, %v402
        %v411 = vsub.f32 %v395, %v403
        %v412 = vsub.f32 %v396, %v404
        %v413 = vsub.f32 %v397, %v405
        %v414 = vsub.f32 %v398, %v406
        %v415 = vsub.f32 %v399, %v407
        %v416 = vmul.f32 %v384, %v384
        %v417 = vmul.f32 %v385, %v385
        %v418 = vmul.f32 %v386, %v386
        %v419 = vmul.f32 %v387, %v387
        %v420 = vmul.f32 %v388, %v388
        %v421 = vmul.f32 %v389, %v389
        %v422 = vmul.f32 %v390, %v390
        %v423 = vmul.f32 %v391, %v391
        %v424 = vmul.f32 %v408, %v408
        %v425 = vmul.f32 %v409, %v409
        %v426 = vmul.f32 %v410, %v410
        %v427 = vmul.f32 %v411, %v411
        %v428 = vmul.f32 %v412, %v412
        %v429 = vmul.f32 %v413, %v413
        %v430 = vmul.f32 %v414, %v414
        %v431 = vmul.f32 %v415, %v415
        %v440 = vrot.slane %v424, 7
        %v441 = vrot.slane %v425, 7
        %v442 = vsel %vm239, %v440, %v441
        %v443 = vrot.slane %v426, 7
        %v444 = vrot.slane %v427, 7
        %v445 = vsel %vm239, %v443, %v444
        %v446 = vrot.slane %v428, 7
        %v447 = vrot.slane %v429, 7
        %v448 = vsel %vm239, %v446, %v447
        %v449 = vrot.slane %v430, 7
        %v450 = vrot.slane %v431, 7
        %v451 = vsel %vm239, %v449, %v450
        %v460 = vadd.f32 %v416, %v440
        %v461 = vadd.f32 %v417, %v442
        %v462 = vadd.f32 %v418, %v443
        %v463 = vadd.f32 %v419, %v445
        %v464 = vadd.f32 %v420, %v446
        %v465 = vadd.f32 %v421, %v448
        %v466 = vadd.f32 %v422, %v449
        %v467 = vadd.f32 %v423, %v451
        %vm468 = vcmask 121857
        %469 = vst.msk [vmem:[%s213 - $0x1] sm:$0xfe] %vm468, %v460
        %vm470 = vcmask 121856
        %471 = vst.msk [vmem:[%s213 + $0x7] sm:$0xff] %vm470, %v461
        %472 = vst.msk [vmem:[%s213 + $0xf] sm:$0xfe] %vm468, %v462
        %473 = vst.msk [vmem:[%s213 + $0x17] sm:$0xff] %vm470, %v463
        %474 = vst.msk [vmem:[%s213 + $0x1f] sm:$0xfe] %vm468, %v464
        %475 = vst.msk [vmem:[%s213 + $0x27] sm:$0xff] %vm470, %v465
        %476 = vst.msk [vmem:[%s213 + $0x2f] sm:$0xfe] %vm468, %v466
        %477 = vst.msk [vmem:[%s213 + $0x37] sm:$0xff] %vm470, %v467
        %s478 = smul.u32 4, %s19
        %p479 = scmp.lt.s32.totalorder %s478, 7
        %s480 = scalar_select %p479, %s478, 7
        %s481 = smul.addr %s480, 2
        %s482 = smul.addr %s481, 8
        %s483 = scalar_lea.vmem %s2, %s482
        // Predicated region
        $region37: #{tpu_custom_call.1} parent=27 // pred_check
          %p484 = pneg %p89
        $region38: #{tpu_custom_call.1} parent=27 // pred_check_branch
          %486 = sbr.rel (%p484) target = $region40
        $region39: #{tpu_custom_call.1} parent=27 // pred_region
          %s487 = smul.u32 4, %s19
        $region40: #{tpu_custom_call.1} parent=27 // pred_fallthru
          _
      $region28: #{tpu_custom_call.1} parent=5 // pred_fallthru
        _
      %p488 = scmp.le.s32.totalorder 2, %s14
      // Predicated region
      $region41: #{tpu_custom_call.1} parent=5 // pred_check
        %p489 = pneg %p488
      $region42: #{tpu_custom_call.1} parent=5 // pred_check_branch
        %491 = sbr.rel (%p489) target = $region44
      $region43: #{tpu_custom_call.1} parent=5 // pred_region
        %s492 = ssub.s32 %s14, 2
        // Predicated region
        $region45: #{tpu_custom_call.1} parent=43 // pred_check
          %p493 = pneg %p95
        $region46: #{tpu_custom_call.1} parent=43 // pred_check_branch
          %495 = sbr.rel (%p493) target = $region48
        $region47: #{tpu_custom_call.1} parent=43 // pred_region
          %s496 = smul.u32 4, %s20
          %p497 = scmp.lt.s32.totalorder %s496, 7
          %s498 = scalar_select %p497, %s496, 7
          %s499 = smul.addr %s498, 2
          %s500 = smul.addr %s499, 8
          %s501 = scalar_lea.vmem %s2, %s500
        $region48: #{tpu_custom_call.1} parent=43 // pred_fallthru
          _
      $region44: #{tpu_custom_call.1} parent=5 // pred_fallthru
        _
    $region6: #{tpu_custom_call.1} parent=1 // loop_footer
      %s18 = sadd.s32 1, %s14
    $region7: #{tpu_custom_call.1} parent=1 // loop_footer_branch
      %13 = sbr.rel target = $region3
    $region8: #{tpu_custom_call.1} parent=1 // loop_exit
      _
    %502 = vsyncpa [#allocation3], 1
    %s503 = scalar_lea.sflag [#allocation3], 1
    %504 = vsyncpa %s503, 1
    %505 = vsyncpa [#allocation5], 1
    %s506 = scalar_lea.sflag [#allocation5], 1
    %507 = vsyncpa %s506, 1

</llo_original>
